<compile_context>
chip_gen: v7x
topology: tpu7x:2x2x1
jax: 0.10.0
libtpu: 0.0.40
codegen_flags: <defaults>
</compile_context>

<pallas_src>
import functools

import jax
import jax.numpy as jnp
from jax.experimental import pallas as pl
from jax.experimental.pallas import tpu as pltpu

_LANE = 128
_SUBLANE = 8
_BLOCK_TARGET_BYTES = 1 << 20  # ~1 MiB of logits per grid step


def _pick_tiles(n, c, r, itemsize):
    """Choose (tile_n, r_tile) so one block is ~1 MiB and VMEM stays bounded."""
    row_bytes = c * _LANE * itemsize          # one 128-pixel row, all classes
    image_bytes = r * row_bytes
    if image_bytes <= _BLOCK_TARGET_BYTES:
        # Small image: whole image per block; batch images to amortize the
        # ~0.35us/step overhead, but keep >= 2 batch steps when N >= 2 so the
        # "parallel" batch axis can feed both v7x TensorCores.
        tile_n = 1
        for d in range(1, n + 1):
            if n % d:
                continue
            if d * image_bytes > _BLOCK_TARGET_BYTES:
                break
            if n >= 2 and n // d < 2:
                break
            tile_n = d
        return tile_n, r
    # Large image: one image per block, tile spatial rows (multiple of 8).
    r_tile = max(_SUBLANE, (_BLOCK_TARGET_BYTES // row_bytes) // _SUBLANE * _SUBLANE)
    return 1, min(r_tile, r)


def _miou_kernel(x_ref, t_ref, inter_ref, union_ref, *, hw, need_mask):
    # x_ref: (B, C, RT, 128) logits, t_ref: (B, 1, RT, 128) int32 class ids
    ht = pl.program_id(1)

    x = x_ref[...].astype(jnp.float32)
    t = t_ref[...][:, 0, :, :]                      # (B, RT, 128)
    B, C, RT, L = x_ref.shape

    if need_mask:
        # Global pixel index of every element of this HW tile; anything at or
        # past hw is tail padding / block overhang.  where-replacement (not a
        # mask multiply) so garbage never reaches the sums.
        row = ht * RT + jax.lax.broadcasted_iota(jnp.int32, (B, RT, L), 1)
        col = jax.lax.broadcasted_iota(jnp.int32, (B, RT, L), 2)
        valid = (row * L + col) < hw
        t = jnp.where(valid, t, -1)                 # never matches a class

    # Softmax over the class axis, unrolled over C: element-wise max/add across
    # C full (RT, 128) slabs -> pure VPU, no cross-sublane reduction per pixel.
    xs = [x[:, c, :, :] for c in range(C)]
    m = xs[0]
    for c in range(1, C):
        m = jnp.maximum(m, xs[c])
    es = [jnp.exp(xc - m) for xc in xs]
    s = es[0]
    for c in range(1, C):
        s = s + es[c]
    # Approx reciprocal on the EUP + one Newton step (f32-accurate, no divide).
    r = pl.reciprocal(s, approx=True)
    r = r * (2.0 - s * r)

    @pl.when(ht == 0)
    def _():
        inter_ref[...] = jnp.zeros_like(inter_ref)
        union_ref[...] = jnp.zeros_like(union_ref)

    for c in range(C):
        pc = es[c] * r                              # softmax prob of class c
        mc = t == c                                 # one-hot(target) as a mask
        inter_c = jnp.sum(jnp.where(mc, pc, 0.0), axis=1)       # (B, 128)
        if need_mask:
            sum_p = jnp.sum(jnp.where(valid, pc, 0.0), axis=1)
        else:
            sum_p = jnp.sum(pc, axis=1)
        count = jnp.sum(mc.astype(jnp.float32), axis=1)
        # union = sum(p) + sum(onehot) - sum(p * onehot)
        union_c = sum_p + count - inter_c
        inter_ref[:, c:c + 1, :] += inter_c[:, None, :]
        union_ref[:, c:c + 1, :] += union_c[:, None, :]


def miou_loss(inputs, target, n_classes=4):
    """inputs: (N, C, H, W) float logits; target: (N, 1, H, W) integer class ids."""
    N, C, H, W = inputs.shape
    assert C == n_classes
    hw = H * W
    R = pl.cdiv(hw, _LANE)

    x = inputs.reshape(N, C, hw)                    # free reshape (contiguous)
    t = target.reshape(N, 1, hw).astype(jnp.int32)

    if R * _LANE != hw:
        # Only when H*W is not a multiple of 128: minimal tail pad so the
        # (rows, 128) view is a plain reshape; the in-kernel mask keeps the
        # tail out of the sums.  Common power-of-two shapes take no copy.
        pad = R * _LANE - hw
        x = jnp.pad(x, ((0, 0), (0, 0), (0, pad)))
        t = jnp.pad(t, ((0, 0), (0, 0), (0, pad)), constant_values=-1)

    x = x.reshape(N, C, R, _LANE)
    t = t.reshape(N, 1, R, _LANE)

    tile_n, r_tile = _pick_tiles(N, C, R, x.dtype.itemsize)
    n_hw_tiles = pl.cdiv(R, r_tile)
    need_mask = (R * _LANE != hw) or (R % r_tile != 0)

    kernel = functools.partial(_miou_kernel, hw=hw, need_mask=need_mask)

    inter_l, union_l = pl.pallas_call(
        kernel,
        out_shape=(jax.ShapeDtypeStruct((N, C, _LANE), jnp.float32),
                   jax.ShapeDtypeStruct((N, C, _LANE), jnp.float32)),
        grid_spec=pltpu.PrefetchScalarGridSpec(
            num_scalar_prefetch=0,
            grid=(N // tile_n, n_hw_tiles),
            in_specs=[
                pl.BlockSpec((tile_n, C, r_tile, _LANE),
                             lambda nb, ht: (nb, 0, ht, 0)),
                pl.BlockSpec((tile_n, 1, r_tile, _LANE),
                             lambda nb, ht: (nb, 0, ht, 0)),
            ],
            out_specs=[
                pl.BlockSpec((tile_n, C, _LANE), lambda nb, ht: (nb, 0, 0)),
                pl.BlockSpec((tile_n, C, _LANE), lambda nb, ht: (nb, 0, 0)),
            ],
        ),
        compiler_params=pltpu.CompilerParams(
            dimension_semantics=("parallel", "arbitrary"),
            vmem_limit_bytes=32 * 1024 * 1024),
    )(x, t)

    # Tiny epilogue in plain JAX: lane reduce, per-class IoU, final mean.
    inter = inter_l.sum(axis=-1)                    # (N, C)
    union = union_l.sum(axis=-1)                    # (N, C)
    return 1.0 - jnp.mean(inter / union)


def _reference_miou_loss(inputs, target, n_classes=4):
    N, C, H, W = inputs.shape
    p = jax.nn.softmax(inputs.astype(jnp.float32), axis=1)
    oh = jax.nn.one_hot(target[:, 0], n_classes, axis=1, dtype=jnp.float32)
    inter = (p * oh).reshape(N, C, -1).sum(-1)
    union = (p + oh - p * oh).reshape(N, C, -1).sum(-1)
    return 1.0 - jnp.mean(inter / union)


if __name__ == "__main__":
    key = jax.random.PRNGKey(0)
    k1, k2 = jax.random.split(key)

    N, C, H, W = 2, 4, 16, 16
    inputs = jax.random.normal(k1, (N, C, H, W), dtype=jnp.float32)
    target = jax.random.randint(k2, (N, 1, H, W), 0, C, dtype=jnp.int32)

    loss = jax.block_until_ready(miou_loss(inputs, target, n_classes=C))
    ref = jax.block_until_ready(_reference_miou_loss(inputs, target, n_classes=C))

    assert jnp.allclose(loss, ref, atol=1e-5, rtol=1e-5), (loss, ref)
    print("KERNEL_OK")
</pallas_src>

<mosaic_0001>
module attributes {stable_mosaic.version = 11 : i64} {
  func.func @_miou_kernel(%arg0: i32, %arg1: i32, %arg2: memref<1x4x2x128xf32, #tpu.memory_space<vmem>>, %arg3: memref<1x1x2x128xi32, #tpu.memory_space<vmem>>, %arg4: memref<1x4x128xf32, #tpu.memory_space<vmem>>, %arg5: memref<1x4x128xf32, #tpu.memory_space<vmem>>) attributes {dimension_semantics = [#tpu.dimension_semantics<parallel>, #tpu.dimension_semantics<arbitrary>], iteration_bounds = array<i64: 2, 1>, scalar_prefetch = 0 : i64, scratch_operands = 0 : i64, tpu.core_type = #tpu.core_type<tc>, window_params = [{transform_indices = @transform_0, window_bounds = array<i64: 1, 4, 2, 128>}, {transform_indices = @transform_1, window_bounds = array<i64: 1, 1, 2, 128>}, {transform_indices = @transform_2, window_bounds = array<i64: 1, 4, 128>}, {transform_indices = @transform_3, window_bounds = array<i64: 1, 4, 128>}]} {
    %c0 = arith.constant 0 : index
    %c0_0 = arith.constant 0 : index
    %c0_1 = arith.constant 0 : index
    %c0_2 = arith.constant 0 : index
    %0 = vector.load %arg2[%c0, %c0_0, %c0_1, %c0_2] : memref<1x4x2x128xf32, #tpu.memory_space<vmem>>, vector<1x4x2x128xf32>
    %c0_3 = arith.constant 0 : index
    %c0_4 = arith.constant 0 : index
    %c0_5 = arith.constant 0 : index
    %c0_6 = arith.constant 0 : index
    %1 = vector.load %arg3[%c0_3, %c0_4, %c0_5, %c0_6] : memref<1x1x2x128xi32, #tpu.memory_space<vmem>>, vector<1x1x2x128xi32>
    %2 = vector.shape_cast %1 : vector<1x1x2x128xi32> to vector<1x2x128xi32>
    %3 = vector.extract_strided_slice %0 {offsets = [0, 0, 0, 0], sizes = [1, 1, 2, 128], strides = [1, 1, 1, 1]} : vector<1x4x2x128xf32> to vector<1x1x2x128xf32>
    %4 = vector.shape_cast %3 : vector<1x1x2x128xf32> to vector<1x2x128xf32>
    %5 = vector.extract_strided_slice %0 {offsets = [0, 1, 0, 0], sizes = [1, 1, 2, 128], strides = [1, 1, 1, 1]} : vector<1x4x2x128xf32> to vector<1x1x2x128xf32>
    %6 = vector.shape_cast %5 : vector<1x1x2x128xf32> to vector<1x2x128xf32>
    %7 = vector.extract_strided_slice %0 {offsets = [0, 2, 0, 0], sizes = [1, 1, 2, 128], strides = [1, 1, 1, 1]} : vector<1x4x2x128xf32> to vector<1x1x2x128xf32>
    %8 = vector.shape_cast %7 : vector<1x1x2x128xf32> to vector<1x2x128xf32>
    %9 = vector.extract_strided_slice %0 {offsets = [0, 3, 0, 0], sizes = [1, 1, 2, 128], strides = [1, 1, 1, 1]} : vector<1x4x2x128xf32> to vector<1x1x2x128xf32>
    %10 = vector.shape_cast %9 : vector<1x1x2x128xf32> to vector<1x2x128xf32>
    %11 = arith.maximumf %4, %6 : vector<1x2x128xf32>
    %12 = arith.maximumf %11, %8 : vector<1x2x128xf32>
    %13 = arith.maximumf %12, %10 : vector<1x2x128xf32>
    %14 = arith.subf %4, %13 : vector<1x2x128xf32>
    %15 = math.exp %14 : vector<1x2x128xf32>
    %16 = arith.subf %6, %13 : vector<1x2x128xf32>
    %17 = math.exp %16 : vector<1x2x128xf32>
    %18 = arith.subf %8, %13 : vector<1x2x128xf32>
    %19 = math.exp %18 : vector<1x2x128xf32>
    %20 = arith.subf %10, %13 : vector<1x2x128xf32>
    %21 = math.exp %20 : vector<1x2x128xf32>
    %22 = arith.addf %15, %17 : vector<1x2x128xf32>
    %23 = arith.addf %22, %19 : vector<1x2x128xf32>
    %24 = arith.addf %23, %21 : vector<1x2x128xf32>
    %25 = tpu.reciprocal %24 {approx = true} : vector<1x2x128xf32> -> vector<1x2x128xf32>
    %26 = arith.mulf %24, %25 : vector<1x2x128xf32>
    %cst = arith.constant 2.000000e+00 : f32
    %27 = vector.broadcast %cst : f32 to vector<1x2x128xf32>
    %28 = arith.subf %27, %26 : vector<1x2x128xf32>
    %29 = arith.mulf %25, %28 : vector<1x2x128xf32>
    %c0_i32 = arith.constant 0 : i32
    %30 = arith.cmpi eq, %arg1, %c0_i32 : i32
    %31 = arith.extui %30 : i1 to i32
    %c0_i32_7 = arith.constant 0 : i32
    %32 = arith.cmpi ne, %31, %c0_i32_7 : i32
    scf.if %32 {
      %cst_70 = arith.constant 0.000000e+00 : f32
      %113 = vector.broadcast %cst_70 : f32 to vector<1x4x128xf32>
      %c0_71 = arith.constant 0 : index
      %c0_72 = arith.constant 0 : index
      %c0_73 = arith.constant 0 : index
      %114 = vector.load %arg4[%c0_71, %c0_72, %c0_73] : memref<1x4x128xf32, #tpu.memory_space<vmem>>, vector<1x4x128xf32>
      tpu.vector_store %arg4[%c0_71, %c0_72, %c0_73], %113 {strides = array<i32>} : memref<1x4x128xf32, #tpu.memory_space<vmem>>, vector<1x4x128xf32>,
      %cst_74 = arith.constant 0.000000e+00 : f32
      %115 = vector.broadcast %cst_74 : f32 to vector<1x4x128xf32>
      %c0_75 = arith.constant 0 : index
      %c0_76 = arith.constant 0 : index
      %c0_77 = arith.constant 0 : index
      %116 = vector.load %arg5[%c0_75, %c0_76, %c0_77] : memref<1x4x128xf32, #tpu.memory_space<vmem>>, vector<1x4x128xf32>
      tpu.vector_store %arg5[%c0_75, %c0_76, %c0_77], %115 {strides = array<i32>} : memref<1x4x128xf32, #tpu.memory_space<vmem>>, vector<1x4x128xf32>,
    } else {
    }
    %33 = arith.mulf %15, %29 : vector<1x2x128xf32>
    %c0_i32_8 = arith.constant 0 : i32
    %34 = vector.broadcast %c0_i32_8 : i32 to vector<1x2x128xi32>
    %35 = arith.cmpi eq, %2, %34 : vector<1x2x128xi32>
    %cst_9 = arith.constant 0.000000e+00 : f32
    %36 = vector.broadcast %cst_9 : f32 to vector<1x2x128xf32>
    %37 = arith.select %35, %33, %36 : vector<1x2x128xi1>, vector<1x2x128xf32>
    %cst_10 = arith.constant dense<0.000000e+00> : vector<1x128xf32>
    %38 = vector.multi_reduction <add>, %37, %cst_10 [1] : vector<1x2x128xf32> to vector<1x128xf32>
    %cst_11 = arith.constant dense<0.000000e+00> : vector<1x128xf32>
    %39 = vector.multi_reduction <add>, %33, %cst_11 [1] : vector<1x2x128xf32> to vector<1x128xf32>
    %40 = arith.extui %35 : vector<1x2x128xi1> to vector<1x2x128xi32>
    %41 = arith.sitofp %40 : vector<1x2x128xi32> to vector<1x2x128xf32>
    %cst_12 = arith.constant dense<0.000000e+00> : vector<1x128xf32>
    %42 = vector.multi_reduction <add>, %41, %cst_12 [1] : vector<1x2x128xf32> to vector<1x128xf32>
    %43 = arith.addf %39, %42 : vector<1x128xf32>
    %44 = arith.subf %43, %38 : vector<1x128xf32>
    %c0_13 = arith.constant 0 : index
    %c0_14 = arith.constant 0 : index
    %c0_15 = arith.constant 0 : index
    %45 = vector.load %arg4[%c0_13, %c0_14, %c0_15] : memref<1x4x128xf32, #tpu.memory_space<vmem>>, vector<1x1x128xf32>
    %46 = vector.shape_cast %38 : vector<1x128xf32> to vector<1x1x128xf32>
    %47 = arith.addf %45, %46 : vector<1x1x128xf32>
    %c0_16 = arith.constant 0 : index
    %c0_17 = arith.constant 0 : index
    %c0_18 = arith.constant 0 : index
    %48 = vector.load %arg4[%c0_16, %c0_17, %c0_18] : memref<1x4x128xf32, #tpu.memory_space<vmem>>, vector<1x1x128xf32>
    tpu.vector_store %arg4[%c0_16, %c0_17, %c0_18], %47 {strides = array<i32>} : memref<1x4x128xf32, #tpu.memory_space<vmem>>, vector<1x1x128xf32>,
    %c0_19 = arith.constant 0 : index
    %c0_20 = arith.constant 0 : index
    %c0_21 = arith.constant 0 : index
    %49 = vector.load %arg5[%c0_19, %c0_20, %c0_21] : memref<1x4x128xf32, #tpu.memory_space<vmem>>, vector<1x1x128xf32>
    %50 = vector.shape_cast %44 : vector<1x128xf32> to vector<1x1x128xf32>
    %51 = arith.addf %49, %50 : vector<1x1x128xf32>
    %c0_22 = arith.constant 0 : index
    %c0_23 = arith.constant 0 : index
    %c0_24 = arith.constant 0 : index
    %52 = vector.load %arg5[%c0_22, %c0_23, %c0_24] : memref<1x4x128xf32, #tpu.memory_space<vmem>>, vector<1x1x128xf32>
    tpu.vector_store %arg5[%c0_22, %c0_23, %c0_24], %51 {strides = array<i32>} : memref<1x4x128xf32, #tpu.memory_space<vmem>>, vector<1x1x128xf32>,
    %53 = arith.mulf %17, %29 : vector<1x2x128xf32>
    %c1_i32 = arith.constant 1 : i32
    %54 = vector.broadcast %c1_i32 : i32 to vector<1x2x128xi32>
    %55 = arith.cmpi eq, %2, %54 : vector<1x2x128xi32>
    %cst_25 = arith.constant 0.000000e+00 : f32
    %56 = vector.broadcast %cst_25 : f32 to vector<1x2x128xf32>
    %57 = arith.select %55, %53, %56 : vector<1x2x128xi1>, vector<1x2x128xf32>
    %cst_26 = arith.constant dense<0.000000e+00> : vector<1x128xf32>
    %58 = vector.multi_reduction <add>, %57, %cst_26 [1] : vector<1x2x128xf32> to vector<1x128xf32>
    %cst_27 = arith.constant dense<0.000000e+00> : vector<1x128xf32>
    %59 = vector.multi_reduction <add>, %53, %cst_27 [1] : vector<1x2x128xf32> to vector<1x128xf32>
    %60 = arith.extui %55 : vector<1x2x128xi1> to vector<1x2x128xi32>
    %61 = arith.sitofp %60 : vector<1x2x128xi32> to vector<1x2x128xf32>
    %cst_28 = arith.constant dense<0.000000e+00> : vector<1x128xf32>
    %62 = vector.multi_reduction <add>, %61, %cst_28 [1] : vector<1x2x128xf32> to vector<1x128xf32>
    %63 = arith.addf %59, %62 : vector<1x128xf32>
    %64 = arith.subf %63, %58 : vector<1x128xf32>
    %c0_29 = arith.constant 0 : index
    %c1 = arith.constant 1 : index
    %c0_30 = arith.constant 0 : index
    %65 = vector.load %arg4[%c0_29, %c1, %c0_30] : memref<1x4x128xf32, #tpu.memory_space<vmem>>, vector<1x1x128xf32>
    %66 = vector.shape_cast %58 : vector<1x128xf32> to vector<1x1x128xf32>
    %67 = arith.addf %65, %66 : vector<1x1x128xf32>
    %c0_31 = arith.constant 0 : index
    %c1_32 = arith.constant 1 : index
    %c0_33 = arith.constant 0 : index
    %68 = vector.load %arg4[%c0_31, %c1_32, %c0_33] : memref<1x4x128xf32, #tpu.memory_space<vmem>>, vector<1x1x128xf32>
    tpu.vector_store %arg4[%c0_31, %c1_32, %c0_33], %67 {strides = array<i32>} : memref<1x4x128xf32, #tpu.memory_space<vmem>>, vector<1x1x128xf32>,
    %c0_34 = arith.constant 0 : index
    %c1_35 = arith.constant 1 : index
    %c0_36 = arith.constant 0 : index
    %69 = vector.load %arg5[%c0_34, %c1_35, %c0_36] : memref<1x4x128xf32, #tpu.memory_space<vmem>>, vector<1x1x128xf32>
    %70 = vector.shape_cast %64 : vector<1x128xf32> to vector<1x1x128xf32>
    %71 = arith.addf %69, %70 : vector<1x1x128xf32>
    %c0_37 = arith.constant 0 : index
    %c1_38 = arith.constant 1 : index
    %c0_39 = arith.constant 0 : index
    %72 = vector.load %arg5[%c0_37, %c1_38, %c0_39] : memref<1x4x128xf32, #tpu.memory_space<vmem>>, vector<1x1x128xf32>
    tpu.vector_store %arg5[%c0_37, %c1_38, %c0_39], %71 {strides = array<i32>} : memref<1x4x128xf32, #tpu.memory_space<vmem>>, vector<1x1x128xf32>,
    %73 = arith.mulf %19, %29 : vector<1x2x128xf32>
    %c2_i32 = arith.constant 2 : i32
    %74 = vector.broadcast %c2_i32 : i32 to vector<1x2x128xi32>
    %75 = arith.cmpi eq, %2, %74 : vector<1x2x128xi32>
    %cst_40 = arith.constant 0.000000e+00 : f32
    %76 = vector.broadcast %cst_40 : f32 to vector<1x2x128xf32>
    %77 = arith.select %75, %73, %76 : vector<1x2x128xi1>, vector<1x2x128xf32>
    %cst_41 = arith.constant dense<0.000000e+00> : vector<1x128xf32>
    %78 = vector.multi_reduction <add>, %77, %cst_41 [1] : vector<1x2x128xf32> to vector<1x128xf32>
    %cst_42 = arith.constant dense<0.000000e+00> : vector<1x128xf32>
    %79 = vector.multi_reduction <add>, %73, %cst_42 [1] : vector<1x2x128xf32> to vector<1x128xf32>
    %80 = arith.extui %75 : vector<1x2x128xi1> to vector<1x2x128xi32>
    %81 = arith.sitofp %80 : vector<1x2x128xi32> to vector<1x2x128xf32>
    %cst_43 = arith.constant dense<0.000000e+00> : vector<1x128xf32>
    %82 = vector.multi_reduction <add>, %81, %cst_43 [1] : vector<1x2x128xf32> to vector<1x128xf32>
    %83 = arith.addf %79, %82 : vector<1x128xf32>
    %84 = arith.subf %83, %78 : vector<1x128xf32>
    %c0_44 = arith.constant 0 : index
    %c2 = arith.constant 2 : index
    %c0_45 = arith.constant 0 : index
    %85 = vector.load %arg4[%c0_44, %c2, %c0_45] : memref<1x4x128xf32, #tpu.memory_space<vmem>>, vector<1x1x128xf32>
    %86 = vector.shape_cast %78 : vector<1x128xf32> to vector<1x1x128xf32>
    %87 = arith.addf %85, %86 : vector<1x1x128xf32>
    %c0_46 = arith.constant 0 : index
    %c2_47 = arith.constant 2 : index
    %c0_48 = arith.constant 0 : index
    %88 = vector.load %arg4[%c0_46, %c2_47, %c0_48] : memref<1x4x128xf32, #tpu.memory_space<vmem>>, vector<1x1x128xf32>
    tpu.vector_store %arg4[%c0_46, %c2_47, %c0_48], %87 {strides = array<i32>} : memref<1x4x128xf32, #tpu.memory_space<vmem>>, vector<1x1x128xf32>,
    %c0_49 = arith.constant 0 : index
    %c2_50 = arith.constant 2 : index
    %c0_51 = arith.constant 0 : index
    %89 = vector.load %arg5[%c0_49, %c2_50, %c0_51] : memref<1x4x128xf32, #tpu.memory_space<vmem>>, vector<1x1x128xf32>
    %90 = vector.shape_cast %84 : vector<1x128xf32> to vector<1x1x128xf32>
    %91 = arith.addf %89, %90 : vector<1x1x128xf32>
    %c0_52 = arith.constant 0 : index
    %c2_53 = arith.constant 2 : index
    %c0_54 = arith.constant 0 : index
    %92 = vector.load %arg5[%c0_52, %c2_53, %c0_54] : memref<1x4x128xf32, #tpu.memory_space<vmem>>, vector<1x1x128xf32>
    tpu.vector_store %arg5[%c0_52, %c2_53, %c0_54], %91 {strides = array<i32>} : memref<1x4x128xf32, #tpu.memory_space<vmem>>, vector<1x1x128xf32>,
    %93 = arith.mulf %21, %29 : vector<1x2x128xf32>
    %c3_i32 = arith.constant 3 : i32
    %94 = vector.broadcast %c3_i32 : i32 to vector<1x2x128xi32>
    %95 = arith.cmpi eq, %2, %94 : vector<1x2x128xi32>
    %cst_55 = arith.constant 0.000000e+00 : f32
    %96 = vector.broadcast %cst_55 : f32 to vector<1x2x128xf32>
    %97 = arith.select %95, %93, %96 : vector<1x2x128xi1>, vector<1x2x128xf32>
    %cst_56 = arith.constant dense<0.000000e+00> : vector<1x128xf32>
    %98 = vector.multi_reduction <add>, %97, %cst_56 [1] : vector<1x2x128xf32> to vector<1x128xf32>
    %cst_57 = arith.constant dense<0.000000e+00> : vector<1x128xf32>
    %99 = vector.multi_reduction <add>, %93, %cst_57 [1] : vector<1x2x128xf32> to vector<1x128xf32>
    %100 = arith.extui %95 : vector<1x2x128xi1> to vector<1x2x128xi32>
    %101 = arith.sitofp %100 : vector<1x2x128xi32> to vector<1x2x128xf32>
    %cst_58 = arith.constant dense<0.000000e+00> : vector<1x128xf32>
    %102 = vector.multi_reduction <add>, %101, %cst_58 [1] : vector<1x2x128xf32> to vector<1x128xf32>
    %103 = arith.addf %99, %102 : vector<1x128xf32>
    %104 = arith.subf %103, %98 : vector<1x128xf32>
    %c0_59 = arith.constant 0 : index
    %c3 = arith.constant 3 : index
    %c0_60 = arith.constant 0 : index
    %105 = vector.load %arg4[%c0_59, %c3, %c0_60] : memref<1x4x128xf32, #tpu.memory_space<vmem>>, vector<1x1x128xf32>
    %106 = vector.shape_cast %98 : vector<1x128xf32> to vector<1x1x128xf32>
    %107 = arith.addf %105, %106 : vector<1x1x128xf32>
    %c0_61 = arith.constant 0 : index
    %c3_62 = arith.constant 3 : index
    %c0_63 = arith.constant 0 : index
    %108 = vector.load %arg4[%c0_61, %c3_62, %c0_63] : memref<1x4x128xf32, #tpu.memory_space<vmem>>, vector<1x1x128xf32>
    tpu.vector_store %arg4[%c0_61, %c3_62, %c0_63], %107 {strides = array<i32>} : memref<1x4x128xf32, #tpu.memory_space<vmem>>, vector<1x1x128xf32>,
    %c0_64 = arith.constant 0 : index
    %c3_65 = arith.constant 3 : index
    %c0_66 = arith.constant 0 : index
    %109 = vector.load %arg5[%c0_64, %c3_65, %c0_66] : memref<1x4x128xf32, #tpu.memory_space<vmem>>, vector<1x1x128xf32>
    %110 = vector.shape_cast %104 : vector<1x128xf32> to vector<1x1x128xf32>
    %111 = arith.addf %109, %110 : vector<1x1x128xf32>
    %c0_67 = arith.constant 0 : index
    %c3_68 = arith.constant 3 : index
    %c0_69 = arith.constant 0 : index
    %112 = vector.load %arg5[%c0_67, %c3_68, %c0_69] : memref<1x4x128xf32, #tpu.memory_space<vmem>>, vector<1x1x128xf32>
    tpu.vector_store %arg5[%c0_67, %c3_68, %c0_69], %111 {strides = array<i32>} : memref<1x4x128xf32, #tpu.memory_space<vmem>>, vector<1x1x128xf32>,
    return
  }
  func.func @transform_0(%arg0: i32, %arg1: i32) -> (i32, i32, i32, i32) {
    %c0_i32 = arith.constant 0 : i32
    %c0_i32_0 = arith.constant 0 : i32
    %c0_i32_1 = arith.constant 0 : i32
    return %arg0, %c0_i32, %arg1, %c0_i32_0 : i32, i32, i32, i32
  }
  func.func @transform_1(%arg0: i32, %arg1: i32) -> (i32, i32, i32, i32) {
    %c0_i32 = arith.constant 0 : i32
    %c0_i32_0 = arith.constant 0 : i32
    %c0_i32_1 = arith.constant 0 : i32
    return %arg0, %c0_i32, %arg1, %c0_i32_0 : i32, i32, i32, i32
  }
  func.func @transform_2(%arg0: i32, %arg1: i32) -> (i32, i32, i32) {
    %c0_i32 = arith.constant 0 : i32
    %c0_i32_0 = arith.constant 0 : i32
    %c0_i32_1 = arith.constant 0 : i32
    return %arg0, %c0_i32, %c0_i32_0 : i32, i32, i32
  }
  func.func @transform_3(%arg0: i32, %arg1: i32) -> (i32, i32, i32) {
    %c0_i32 = arith.constant 0 : i32
    %c0_i32_0 = arith.constant 0 : i32
    %c0_i32_1 = arith.constant 0 : i32
    return %arg0, %c0_i32, %c0_i32_0 : i32, i32, i32
  }
}

</mosaic_0001>

<llo_original>
// kernel: tpu_custom_call.1
$region0: #{tpu_custom_call.1}
  #allocation0 [shape = 'u32[]', space=smem, size = 0x4, offset = 0x4, fixed_abs, tag = 'smem constant byte address 0x4 - core index']
  #allocation1 [shape = 'u32[144,128]{1,0:T(1,128)}', space=vmem, size = 0x12000, scoped, tag = 'internal scratch']
  %s0 = inlined_call_operand.hbm [shape: f32[2,4,2,128], index: 0, kind: input, shape index: {}]
  %s1 = inlined_call_operand.hbm [shape: s32[2,1,2,128], index: 1, kind: input, shape index: {}]
  %s2 = inlined_call_operand.hbm [shape: f32[2,4,128], index: 2, kind: output, shape index: {0}]
  %s3 = inlined_call_operand.hbm [shape: f32[2,4,128], index: 3, kind: output, shape index: {1}]
  %4 = xla_tuple %s2, %s3
  %s5 = sld [smem:[#allocation0]]
  $region61: #{tpu_custom_call.1} parent=0
    _
  %s7 = ssub.s32 1, %s5
  %s8 = scalar_select 0, %s7, %s5
  $region1: #{tpu_custom_call.1} parent=0
    #allocation2 [shape = 'u8[8192]{0}', space=vmem, size = 0x2000, scoped, tag = 'input window, operand 0']
    #allocation3 [shape = 's32[2]{0}', space=sflag, size = 0x8, scoped, tag = 'scoped memory for tpu_custom_call.1']
    #allocation4 [shape = 's32[2]{0}', space=sflag, size = 0x8, scoped, tag = 'scoped memory for tpu_custom_call.1']
    #allocation5 [shape = 'u8[2048]{0}', space=vmem, size = 0x800, scoped, tag = 'input window, operand 1']
    #allocation6 [shape = 's32[2]{0}', space=sflag, size = 0x8, scoped, tag = 'scoped memory for tpu_custom_call.1']
    #allocation7 [shape = 'u8[4096]{0}', space=vmem, size = 0x1000, scoped, tag = 'output window, operand 0']
    #allocation8 [shape = 'u8[4096]{0}', space=vmem, size = 0x1000, scoped, tag = 'output window, operand 1']
    #allocation9 [shape = 's32[2]{0}', space=sflag, size = 0x8, scoped, tag = 'scoped memory for tpu_custom_call.1']
    %9 = vsyncpa [#allocation3], 0
    %s10 = scalar_lea.sflag [#allocation3], 1
    %11 = vsyncpa %s10, 0
    %12 = vsyncpa [#allocation6], 0
    %s13 = scalar_lea.sflag [#allocation6], 1
    %14 = vsyncpa %s13, 0
    %15 = vsyncpa [#allocation4], 0
    %s16 = scalar_lea.sflag [#allocation4], 1
    %17 = vsyncpa %s16, 0
    %18 = vsyncpa [#allocation9], 0
    %s19 = scalar_lea.sflag [#allocation9], 1
    %20 = vsyncpa %s19, 0
    loop: start=0, step=1, limit=4
    $region2: #{tpu_custom_call.1} parent=1 // loop_pre_header
      _
    $region3: #{tpu_custom_call.1} parent=1 // loop_header
      %s22 = sphi 0, %s26
      %p23 = scmp.ge.s32.totalorder %s22, 4
      %s29 = sphi 0, %s41
      %s30 = sphi 0, %s37
      %s31 = sphi 0, %s29
      %s32 = sphi 0, %s30
      %s33 = sphi 0, %s31
      %s34 = sphi 0, %s32
      %s46 = sphi 0, %s48
      %s49 = sphi 0, %s46
      %s50 = sphi 0, %s49
      %s66 = sphi 0, %s50
      %s74 = sphi 0, %s76
      %s77 = sphi 0, %s74
      %s78 = sphi 0, %s77
      %s94 = sphi 0, %s78
      %s100 = sphi 0, %s102
      %s103 = sphi 0, %s100
      %s104 = sphi 0, %s103
      %s120 = sphi 0, %s104
      %s126 = sphi 0, %s128
      %s129 = sphi 0, %s126
      %s130 = sphi 0, %s129
      %s146 = sphi 0, %s130
    $region4: #{tpu_custom_call.1} parent=1 // loop_header_branch
      %25 = sbr.rel (%p23) target = $region8
    $region5: #{tpu_custom_call.1} parent=1 // loop_body
      %s27 = ssub.s32 %s22, 1
      %s28 = ssub.s32 %s22, 2
      %s35 = sadd.s32 1, %s30
      %p36 = scmp.ge.s32.totalorder %s35, 1
      %s37 = scalar_select %p36, 0, %s35
      %s38 = sadd.s32 1, %s29
      %s39 = scalar_select %p36, %s38, %s29
      %p40 = scmp.ge.s32.totalorder %s39, 2
      %s41 = scalar_select %p40, 0, %s39
      %s42 = ssub.s32 %s29, %s41
      %s43 = ssub.s32 %s30, %s37
      %s44 = sor.u32 %s42, %s43
      %p45 = scmp.eq.s32.totalorder %s44, 0
      %s47 = sadd.s32 %s46, 1
      %s48 = scalar_select %p45, %s46, %s47
      %p51 = pneg %p45
      %p52 = scmp.eq.s32.totalorder %s22, 1
      %p53 = por %p51, %p52
      %p54 = scmp.ne.s32.totalorder %s46, %s49
      %p55 = scmp.eq.s32.totalorder %s22, 0
      %p56 = por %p54, %p55
      %p57 = scmp.ne.s32.totalorder %s46, %s49
      %p58 = scmp.eq.s32.totalorder %s27, 1
      %p59 = por %p57, %p58
      %p60 = scmp.ne.s32.totalorder %s49, %s50
      %p61 = scmp.eq.s32.totalorder %s27, 0
      %p62 = por %p60, %p61
      %p63 = scmp.ne.s32.totalorder %s49, %s50
      %p64 = scmp.eq.s32.totalorder %s28, 1
      %p65 = por %p63, %p64
      %p67 = scmp.ne.s32.totalorder %s50, %s66
      %p68 = scmp.eq.s32.totalorder %s28, 0
      %p69 = por %p67, %p68
      %s70 = ssub.s32 %s29, %s41
      %s71 = ssub.s32 %s30, %s37
      %s72 = sor.u32 %s70, %s71
      %p73 = scmp.eq.s32.totalorder %s72, 0
      %s75 = sadd.s32 %s74, 1
      %s76 = scalar_select %p73, %s74, %s75
      %p79 = pneg %p73
      %p80 = scmp.eq.s32.totalorder %s22, 1
      %p81 = por %p79, %p80
      %p82 = scmp.ne.s32.totalorder %s74, %s77
      %p83 = scmp.eq.s32.totalorder %s22, 0
      %p84 = por %p82, %p83
      %p85 = scmp.ne.s32.totalorder %s74, %s77
      %p86 = scmp.eq.s32.totalorder %s27, 1
      %p87 = por %p85, %p86
      %p88 = scmp.ne.s32.totalorder %s77, %s78
      %p89 = scmp.eq.s32.totalorder %s27, 0
      %p90 = por %p88, %p89
      %p91 = scmp.ne.s32.totalorder %s77, %s78
      %p92 = scmp.eq.s32.totalorder %s28, 1
      %p93 = por %p91, %p92
      %p95 = scmp.ne.s32.totalorder %s78, %s94
      %p96 = scmp.eq.s32.totalorder %s28, 0
      %p97 = por %p95, %p96
      %s98 = ssub.s32 %s29, %s41
      %p99 = scmp.eq.s32.totalorder %s98, 0
      %s101 = sadd.s32 %s100, 1
      %s102 = scalar_select %p99, %s100, %s101
      %p105 = pneg %p99
      %p106 = scmp.eq.s32.totalorder %s22, 1
      %p107 = por %p105, %p106
      %p108 = scmp.ne.s32.totalorder %s100, %s103
      %p109 = scmp.eq.s32.totalorder %s22, 0
      %p110 = por %p108, %p109
      %p111 = scmp.ne.s32.totalorder %s100, %s103
      %p112 = scmp.eq.s32.totalorder %s27, 1
      %p113 = por %p111, %p112
      %p114 = scmp.ne.s32.totalorder %s103, %s104
      %p115 = scmp.eq.s32.totalorder %s27, 0
      %p116 = por %p114, %p115
      %p117 = scmp.ne.s32.totalorder %s103, %s104
      %p118 = scmp.eq.s32.totalorder %s28, 1
      %p119 = por %p117, %p118
      %p121 = scmp.ne.s32.totalorder %s104, %s120
      %p122 = scmp.eq.s32.totalorder %s28, 0
      %p123 = por %p121, %p122
      %s124 = ssub.s32 %s29, %s41
      %p125 = scmp.eq.s32.totalorder %s124, 0
      %s127 = sadd.s32 %s126, 1
      %s128 = scalar_select %p125, %s126, %s127
      %p131 = pneg %p125
      %p132 = scmp.eq.s32.totalorder %s22, 1
      %p133 = por %p131, %p132
      %p134 = scmp.ne.s32.totalorder %s126, %s129
      %p135 = scmp.eq.s32.totalorder %s22, 0
      %p136 = por %p134, %p135
      %p137 = scmp.ne.s32.totalorder %s126, %s129
      %p138 = scmp.eq.s32.totalorder %s27, 1
      %p139 = por %p137, %p138
      %p140 = scmp.ne.s32.totalorder %s129, %s130
      %p141 = scmp.eq.s32.totalorder %s27, 0
      %p142 = por %p140, %p141
      %p143 = scmp.ne.s32.totalorder %s129, %s130
      %p144 = scmp.eq.s32.totalorder %s28, 1
      %p145 = por %p143, %p144
      %p147 = scmp.ne.s32.totalorder %s130, %s146
      %p148 = scmp.eq.s32.totalorder %s28, 0
      %p149 = por %p147, %p148
      %p150 = scmp.le.s32.totalorder 1, %s22
      %p151 = scmp.lt.s32.totalorder %s22, 3
      %p152 = pnand %p150, %p151
      %p153 = pneg %p152
      // Predicated region
      $region9: #{tpu_custom_call.1} parent=5 // pred_check
        _
      $region10: #{tpu_custom_call.1} parent=5 // pred_check_branch
        %155 = sbr.rel (%p152) target = $region12
      $region11: #{tpu_custom_call.1} parent=5 // pred_region
        %s156 = ssub.s32 %s22, 1
      $region12: #{tpu_custom_call.1} parent=5 // pred_fallthru
        _
      %p157 = scmp.lt.s32.totalorder %s22, 2
      // Predicated region
      $region13: #{tpu_custom_call.1} parent=5 // pred_check
        %p158 = pneg %p157
      $region14: #{tpu_custom_call.1} parent=5 // pred_check_branch
        %160 = sbr.rel (%p158) target = $region16
      $region15: #{tpu_custom_call.1} parent=5 // pred_region
        // Predicated region
        $region17: #{tpu_custom_call.1} parent=15 // pred_check
          %p161 = pneg %p56
        $region18: #{tpu_custom_call.1} parent=15 // pred_check_branch
          %163 = sbr.rel (%p161) target = $region20
        $region19: #{tpu_custom_call.1} parent=15 // pred_region
          %s164 = sand.u32 %s46, 1
          %s165 = scalar_lea.sflag [#allocation3], %s164
          %s166 = sand.u32 %s46, 1
          %s167 = smul.addr %s166, 8
          %s168 = scalar_lea.vmem [#allocation2], %s167
          %s170 = ssub.s32 128, 128
          %171 = vsyncadd %s165, %s170
          %s172 = smul.addr %s29, 4
          %s173 = sadd.s32 %s30, %s172
          %s174 = smul.addr %s173, 32
          %s175 = scalar_lea.hbm %s0, %s174
          %s176 = sshll.u32 %s168, 4
          %s177 = int_to_ptr.vmem [resolvable:$true] %s176
          %182 = dma.hbm_to_vmem [thread:$0]  %s175, 128, %s177, %s165, 32, 32, 2
        $region20: #{tpu_custom_call.1} parent=15 // pred_fallthru
          _
        // Predicated region
        $region21: #{tpu_custom_call.1} parent=15 // pred_check
          %p183 = pneg %p84
        $region22: #{tpu_custom_call.1} parent=15 // pred_check_branch
          %185 = sbr.rel (%p183) target = $region24
        $region23: #{tpu_custom_call.1} parent=15 // pred_region
          %s186 = sand.u32 %s74, 1
          %s187 = scalar_lea.sflag [#allocation6], %s186
          %s188 = sand.u32 %s74, 1
          %s189 = smul.addr %s188, 2
          %s190 = scalar_lea.vmem [#allocation5], %s189
          %s192 = ssub.s32 32, 32
          %193 = vsyncadd %s187, %s192
          %s194 = sadd.s32 %s30, %s29
          %s195 = smul.addr %s194, 32
          %s196 = scalar_lea.hbm %s1, %s195
          %s198 = sshll.u32 %s190, 4
          %s199 = int_to_ptr.vmem [resolvable:$true] %s198
          %201 = dma.hbm_to_vmem [thread:$0]  %s196, 32, %s199, %s187
        $region24: #{tpu_custom_call.1} parent=15 // pred_fallthru
          _
      $region16: #{tpu_custom_call.1} parent=5 // pred_fallthru
        _
      %p202 = scmp.le.s32.totalorder 1, %s22
      %p203 = scmp.lt.s32.totalorder %s22, 3
      %p204 = pnand %p202, %p203
      %p205 = pneg %p204
      // Predicated region
      $region25: #{tpu_custom_call.1} parent=5 // pred_check
        _
      $region26: #{tpu_custom_call.1} parent=5 // pred_check_branch
        %207 = sbr.rel (%p204) target = $region28
      $region27: #{tpu_custom_call.1} parent=5 // pred_region
        %s208 = ssub.s32 %s22, 1
        %s209 = sand.u32 %s49, 1
        %s210 = scalar_lea.sflag [#allocation3], %s209
        %s211 = sand.u32 %s49, 1
        %s212 = smul.addr %s211, 8
        %s213 = scalar_lea.vmem [#allocation2], %s212
        // Predicated region
        $region29: #{tpu_custom_call.1} parent=27 // pred_check
          %p214 = pneg %p62
        $region30: #{tpu_custom_call.1} parent=27 // pred_check_branch
          %216 = sbr.rel (%p214) target = $region32
        $region31: #{tpu_custom_call.1} parent=27 // pred_region
          %217 = dma.done %s210, 128
        $region32: #{tpu_custom_call.1} parent=27 // pred_fallthru
          _
        %s218 = sand.u32 %s77, 1
        %s219 = scalar_lea.sflag [#allocation6], %s218
        %s220 = sand.u32 %s77, 1
        %s221 = smul.addr %s220, 2
        %s222 = scalar_lea.vmem [#allocation5], %s221
        // Predicated region
        $region33: #{tpu_custom_call.1} parent=27 // pred_check
          %p223 = pneg %p90
        $region34: #{tpu_custom_call.1} parent=27 // pred_check_branch
          %225 = sbr.rel (%p223) target = $region36
        $region35: #{tpu_custom_call.1} parent=27 // pred_region
          %226 = dma.done %s219, 32
        $region36: #{tpu_custom_call.1} parent=27 // pred_fallthru
          _
        %s227 = sand.u32 %s49, 1
        %s228 = scalar_lea.sflag [#allocation3], %s227
        %s229 = sand.u32 %s49, 1
        %s230 = smul.addr %s229, 8
        %s231 = scalar_lea.vmem [#allocation2], %s230
        %p232 = pneg %p62
        %p233 = pneg %p59
        %s234 = sand.u32 %s77, 1
        %s235 = scalar_lea.sflag [#allocation6], %s234
        %s236 = sand.u32 %s77, 1
        %s237 = smul.addr %s236, 2
        %s238 = scalar_lea.vmem [#allocation5], %s237
        %p239 = pneg %p90
        %p240 = pneg %p87
        %p241 = pneg %p116
        %p242 = pneg %p113
        %s243 = sand.u32 %s103, 1
        %s244 = scalar_lea.sflag [#allocation4], %s243
        %s245 = sand.u32 %s103, 1
        %s246 = smul.addr %s245, 4
        %s247 = scalar_lea.vmem [#allocation7], %s246
        %p248 = pneg %p142
        %p249 = pneg %p139
        %s250 = sand.u32 %s129, 1
        %s251 = scalar_lea.sflag [#allocation9], %s250
        %s252 = sand.u32 %s129, 1
        %s253 = smul.addr %s252, 4
        %s254 = scalar_lea.vmem [#allocation8], %s253
        %v255 = vld [vmem:[%s213] sm:$0x3]
        %v256 = vld [vmem:[%s213 + $0x2] sm:$0x3]
        %v257 = vld [vmem:[%s213 + $0x4] sm:$0x3]
        %v258 = vld [vmem:[%s213 + $0x6] sm:$0x3]
        %v259 = vld [vmem:[%s222] sm:$0x3]
        %v260 = vmax.f32 %v255, %v256
        %v261 = vmax.f32 %v260, %v257
        %v262 = vmax.f32 %v261, %v258
        %v263 = vsub.f32 %v255, %v262
        %v264 = vmul.f32 %v263, 1.442695
        %v265 = vpow.pop %v264
        %v266 = vsub.f32 %v256, %v262
        %v267 = vmul.f32 %v266, 1.442695
        %v268 = vpow.pop %v267
        %v269 = vsub.f32 %v257, %v262
        %v270 = vmul.f32 %v269, 1.442695
        %v271 = vpow.pop %v270
        %v272 = vsub.f32 %v258, %v262
        %v273 = vmul.f32 %v272, 1.442695
        %v274 = vpow.pop %v273
        %v275 = vadd.f32 %v265, %v268
        %v276 = vadd.f32 %v275, %v271
        %v277 = vadd.f32 %v276, %v274
        %v278 = vrcp.pop %v277
        %v279 = vmul.f32 %v277, %v278
        %v280 = vsub.f32 2.0, %v279
        %v281 = vmul.f32 %v278, %v280
        %p282 = scmp.eq.s32.totalorder %s32, 0
        // Predicated region
        $region37: #{tpu_custom_call.1} parent=27 // pred_check
          %p283 = pneg %p282
        $region38: #{tpu_custom_call.1} parent=27 // pred_check_branch
          %285 = sbr.rel (%p283) target = $region40
        $region39: #{tpu_custom_call.1} parent=27 // pred_region
          %286 = vst [vmem:[%s247] sm:$0xf] 0.0
          %287 = vst [vmem:[%s254] sm:$0xf] 0.0
        $region40: #{tpu_custom_call.1} parent=27 // pred_fallthru
          _
        %v288 = vmul.f32 %v265, %v281
        %vm289 = vcmp.eq.s32.totalorder %v259, 0
        %v290 = vsel %vm289, %v288, 0.0
        %vm291 = vcmask 1041408
        %v292 = vsel %vm291, %v290, 0.0
        %v293 = vrot.slane %v292, 4
        %v294 = vadd.f32 %v292, %v293
        %v295 = vrot.slane %v294, 2
        %v296 = vadd.f32 %v294, %v295
        %v297 = vrot.slane %v296, 1
        %v298 = vadd.f32 %v296, %v297
        %v299 = vsel %vm291, %v288, 0.0
        %v300 = vrot.slane %v299, 4
        %v301 = vadd.f32 %v299, %v300
        %v302 = vrot.slane %v301, 2
        %v303 = vadd.f32 %v301, %v302
        %v304 = vrot.slane %v303, 1
        %v305 = vadd.f32 %v303, %v304
        %v306 = vsel %vm289, 1, 0
        %v307 = vcvt.s32.f32 %v306
        %v308 = vsel %vm291, %v307, 0.0
        %v309 = vrot.slane %v308, 4
        %v310 = vadd.f32 %v308, %v309
        %v311 = vrot.slane %v310, 2
        %v312 = vadd.f32 %v310, %v311
        %v313 = vrot.slane %v312, 1
        %v314 = vadd.f32 %v312, %v313
        %v315 = vadd.f32 %v305, %v314
        %v316 = vsub.f32 %v315, %v298
        %v317 = vld [vmem:[%s247] sm:$0x1]
        %v318 = vadd.f32 %v317, %v298
        %319 = vst [vmem:[%s247] sm:$0x1] %v318
        %v320 = vld [vmem:[%s254] sm:$0x1]
        %v321 = vadd.f32 %v320, %v316
        %322 = vst [vmem:[%s254] sm:$0x1] %v321
        %v323 = vmul.f32 %v268, %v281
        %vm324 = vcmp.eq.s32.totalorder %v259, 1
        %v325 = vsel %vm324, %v323, 0.0
        %v326 = vsel %vm291, %v325, 0.0
        %v327 = vrot.slane %v326, 4
        %v328 = vadd.f32 %v326, %v327
        %v329 = vrot.slane %v328, 2
        %v330 = vadd.f32 %v328, %v329
        %v331 = vrot.slane %v330, 1
        %v332 = vadd.f32 %v330, %v331
        %v333 = vsel %vm291, %v323, 0.0
        %v334 = vrot.slane %v333, 4
        %v335 = vadd.f32 %v333, %v334
        %v336 = vrot.slane %v335, 2
        %v337 = vadd.f32 %v335, %v336
        %v338 = vrot.slane %v337, 1
        %v339 = vadd.f32 %v337, %v338
        %v340 = vsel %vm324, 1, 0
        %v341 = vcvt.s32.f32 %v340
        %v342 = vsel %vm291, %v341, 0.0
        %v343 = vrot.slane %v342, 4
        %v344 = vadd.f32 %v342, %v343
        %v345 = vrot.slane %v344, 2
        %v346 = vadd.f32 %v344, %v345
        %v347 = vrot.slane %v346, 1
        %v348 = vadd.f32 %v346, %v347
        %v349 = vadd.f32 %v339, %v348
        %v350 = vsub.f32 %v349, %v332
        %v351 = vld [vmem:[%s247 + $0x1] sm:$0x1]
        %v352 = vadd.f32 %v351, %v332
        %353 = vst [vmem:[%s247 + $0x1] sm:$0x1] %v352
        %v354 = vld [vmem:[%s254 + $0x1] sm:$0x1]
        %v355 = vadd.f32 %v354, %v350
        %356 = vst [vmem:[%s254 + $0x1] sm:$0x1] %v355
        %v357 = vmul.f32 %v271, %v281
        %vm358 = vcmp.eq.s32.totalorder %v259, 2
        %v359 = vsel %vm358, %v357, 0.0
        %v360 = vsel %vm291, %v359, 0.0
        %v361 = vrot.slane %v360, 4
        %v362 = vadd.f32 %v360, %v361
        %v363 = vrot.slane %v362, 2
        %v364 = vadd.f32 %v362, %v363
        %v365 = vrot.slane %v364, 1
        %v366 = vadd.f32 %v364, %v365
        %v367 = vsel %vm291, %v357, 0.0
        %v368 = vrot.slane %v367, 4
        %v369 = vadd.f32 %v367, %v368
        %v370 = vrot.slane %v369, 2
        %v371 = vadd.f32 %v369, %v370
        %v372 = vrot.slane %v371, 1
        %v373 = vadd.f32 %v371, %v372
        %v374 = vsel %vm358, 1, 0
        %v375 = vcvt.s32.f32 %v374
        %v376 = vsel %vm291, %v375, 0.0
        %v377 = vrot.slane %v376, 4
        %v378 = vadd.f32 %v376, %v377
        %v379 = vrot.slane %v378, 2
        %v380 = vadd.f32 %v378, %v379
        %v381 = vrot.slane %v380, 1
        %v382 = vadd.f32 %v380, %v381
        %v383 = vadd.f32 %v373, %v382
        %v384 = vsub.f32 %v383, %v366
        %v385 = vld [vmem:[%s247 + $0x2] sm:$0x1]
        %v386 = vadd.f32 %v385, %v366
        %387 = vst [vmem:[%s247 + $0x2] sm:$0x1] %v386
        %v388 = vld [vmem:[%s254 + $0x2] sm:$0x1]
        %v389 = vadd.f32 %v388, %v384
        %390 = vst [vmem:[%s254 + $0x2] sm:$0x1] %v389
        %v391 = vmul.f32 %v274, %v281
        %vm392 = vcmp.eq.s32.totalorder %v259, 3
        %v393 = vsel %vm392, %v391, 0.0
        %v394 = vsel %vm291, %v393, 0.0
        %v395 = vrot.slane %v394, 4
        %v396 = vadd.f32 %v394, %v395
        %v397 = vrot.slane %v396, 2
        %v398 = vadd.f32 %v396, %v397
        %v399 = vrot.slane %v398, 1
        %v400 = vadd.f32 %v398, %v399
        %v401 = vsel %vm291, %v391, 0.0
        %v402 = vrot.slane %v401, 4
        %v403 = vadd.f32 %v401, %v402
        %v404 = vrot.slane %v403, 2
        %v405 = vadd.f32 %v403, %v404
        %v406 = vrot.slane %v405, 1
        %v407 = vadd.f32 %v405, %v406
        %v408 = vsel %vm392, 1, 0
        %v409 = vcvt.s32.f32 %v408
        %v410 = vsel %vm291, %v409, 0.0
        %v411 = vrot.slane %v410, 4
        %v412 = vadd.f32 %v410, %v411
        %v413 = vrot.slane %v412, 2
        %v414 = vadd.f32 %v412, %v413
        %v415 = vrot.slane %v414, 1
        %v416 = vadd.f32 %v414, %v415
        %v417 = vadd.f32 %v407, %v416
        %v418 = vsub.f32 %v417, %v400
        %v419 = vld [vmem:[%s247 + $0x3] sm:$0x1]
        %v420 = vadd.f32 %v419, %v400
        %421 = vst [vmem:[%s247 + $0x3] sm:$0x1] %v420
        %v422 = vld [vmem:[%s254 + $0x3] sm:$0x1]
        %v423 = vadd.f32 %v422, %v418
        %424 = vst [vmem:[%s254 + $0x3] sm:$0x1] %v423
        %s425 = sand.u32 %s103, 1
        %s426 = scalar_lea.sflag [#allocation4], %s425
        %s427 = sand.u32 %s103, 1
        %s428 = smul.addr %s427, 4
        %s429 = scalar_lea.vmem [#allocation7], %s428
        %s430 = sand.u32 %s129, 1
        %s431 = scalar_lea.sflag [#allocation9], %s430
        %s432 = sand.u32 %s129, 1
        %s433 = smul.addr %s432, 4
        %s434 = scalar_lea.vmem [#allocation8], %s433
        // Predicated region
        $region41: #{tpu_custom_call.1} parent=27 // pred_check
          %p435 = pneg %p113
        $region42: #{tpu_custom_call.1} parent=27 // pred_check_branch
          %437 = sbr.rel (%p435) target = $region44
        $region43: #{tpu_custom_call.1} parent=27 // pred_region
          %s439 = ssub.s32 64, 64
          %440 = vsyncadd %s426, %s439
          %s441 = smul.addr %s31, 64
          %s442 = scalar_lea.hbm %s2, %s441
          %s444 = sshll.u32 %s429, 4
          %s445 = int_to_ptr.vmem [resolvable:$true] %s444
          %447 = dma.vmem_to_hbm [thread:$0]  %s445, 64, %s442, %s426
        $region44: #{tpu_custom_call.1} parent=27 // pred_fallthru
          _
        // Predicated region
        $region45: #{tpu_custom_call.1} parent=27 // pred_check
          %p448 = pneg %p139
        $region46: #{tpu_custom_call.1} parent=27 // pred_check_branch
          %450 = sbr.rel (%p448) target = $region48
        $region47: #{tpu_custom_call.1} parent=27 // pred_region
          %s452 = ssub.s32 64, 64
          %453 = vsyncadd %s431, %s452
          %s454 = smul.addr %s31, 64
          %s455 = scalar_lea.hbm %s3, %s454
          %s457 = sshll.u32 %s434, 4
          %s458 = int_to_ptr.vmem [resolvable:$true] %s457
          %460 = dma.vmem_to_hbm [thread:$0]  %s458, 64, %s455, %s431
        $region48: #{tpu_custom_call.1} parent=27 // pred_fallthru
          _
      $region28: #{tpu_custom_call.1} parent=5 // pred_fallthru
        _
      %p461 = scmp.le.s32.totalorder 2, %s22
      // Predicated region
      $region49: #{tpu_custom_call.1} parent=5 // pred_check
        %p462 = pneg %p461
      $region50: #{tpu_custom_call.1} parent=5 // pred_check_branch
        %464 = sbr.rel (%p462) target = $region52
      $region51: #{tpu_custom_call.1} parent=5 // pred_region
        %s465 = ssub.s32 %s22, 2
        // Predicated region
        $region53: #{tpu_custom_call.1} parent=51 // pred_check
          %p466 = pneg %p119
        $region54: #{tpu_custom_call.1} parent=51 // pred_check_branch
          %468 = sbr.rel (%p466) target = $region56
        $region55: #{tpu_custom_call.1} parent=51 // pred_region
          %s469 = sand.u32 %s104, 1
          %s470 = scalar_lea.sflag [#allocation4], %s469
          %s471 = sand.u32 %s104, 1
          %s472 = smul.addr %s471, 4
          %s473 = scalar_lea.vmem [#allocation7], %s472
          %474 = dma.done %s470, 64
        $region56: #{tpu_custom_call.1} parent=51 // pred_fallthru
          _
        // Predicated region
        $region57: #{tpu_custom_call.1} parent=51 // pred_check
          %p475 = pneg %p145
        $region58: #{tpu_custom_call.1} parent=51 // pred_check_branch
          %477 = sbr.rel (%p475) target = $region60
        $region59: #{tpu_custom_call.1} parent=51 // pred_region
          %s478 = sand.u32 %s130, 1
          %s479 = scalar_lea.sflag [#allocation9], %s478
          %s480 = sand.u32 %s130, 1
          %s481 = smul.addr %s480, 4
          %s482 = scalar_lea.vmem [#allocation8], %s481
          %483 = dma.done %s479, 64
        $region60: #{tpu_custom_call.1} parent=51 // pred_fallthru
          _
      $region52: #{tpu_custom_call.1} parent=5 // pred_fallthru
        _
    $region6: #{tpu_custom_call.1} parent=1 // loop_footer
      %s26 = sadd.s32 1, %s22
    $region7: #{tpu_custom_call.1} parent=1 // loop_footer_branch
      %21 = sbr.rel target = $region3
    $region8: #{tpu_custom_call.1} parent=1 // loop_exit
      _
    %484 = vsyncpa [#allocation3], 1
    %s485 = scalar_lea.sflag [#allocation3], 1
    %486 = vsyncpa %s485, 1
    %487 = vsyncpa [#allocation6], 1
    %s488 = scalar_lea.sflag [#allocation6], 1
    %489 = vsyncpa %s488, 1
    %490 = vsyncpa [#allocation4], 1
    %s491 = scalar_lea.sflag [#allocation4], 1
    %492 = vsyncpa %s491, 1
    %493 = vsyncpa [#allocation9], 1
    %s494 = scalar_lea.sflag [#allocation9], 1
    %495 = vsyncpa %s494, 1

</llo_original>
